<compile_context>
chip_gen: v7x
topology: tpu7x:2x2x1
jax: 0.10.0
libtpu: 0.0.40
codegen_flags: <defaults>
</compile_context>

<pallas_src>
import functools
from math import factorial

import jax
import jax.numpy as jnp
from jax.experimental import pallas as pl
from jax.experimental.pallas import tpu as pltpu

ORDER = 2  # Taylor order n (even -> polynomial strictly positive, denom > 0)

_LANE = 128                      # lane width (last-dim VMEM tiling unit)
_TM_CAP = 8192                   # rows; at c_lane=128/f32 this is a ~4 MiB block per buffer
_MIN_SPLIT_BLOCK_BYTES = 1 << 20 # only split the batch for megacore if halves stay >= 1 MiB


def _round_up(v: int, m: int) -> int:
    return -(-v // m) * m


def _vmem_limit_bytes() -> int:
    """Generation-aware scoped-VMEM limit: 64 MiB on v5e/v6e, 48 MiB on v7x."""
    cap = None
    try:
        cap = getattr(pltpu.get_tpu_info(), "vmem_capacity_bytes", None)
    except Exception:
        cap = None
    if not cap:
        cap = 64 * 1024 * 1024          # conservative fallback: v7x physical VMEM
    return min(int(cap) * 3 // 4, 64 * 1024 * 1024)


def _choose_tm(batch: int, n_classes: int, itemsize: int, vmem_budget: int) -> int:
    # Sublane packing: 8 rows for 32-bit I/O, 16 for 16-bit (bf16/f16).
    sub = 8 if itemsize >= 4 else 16
    c_lane = _round_up(n_classes, _LANE)     # VMEM lane footprint of one row
    # Per tile row: in + out pipeline buffers (2 arrays x 2 buffers x itemsize)
    # plus the single-buffered f32 intermediates (x cast + Horner poly).
    per_row = 2 * 2 * c_lane * itemsize + 2 * c_lane * 4
    tm = max(sub, vmem_budget // per_row)
    tm = min(tm, _TM_CAP)
    # Megacore: keep >= 2 grid steps (v7x has 2 TensorCores sharding the
    # "parallel" axis) as long as each half-batch block still moves >= ~1 MiB.
    half = _round_up((batch + 1) // 2, sub)
    if half * c_lane * itemsize >= _MIN_SPLIT_BLOCK_BYTES:
        tm = min(tm, half)
    tm = max(sub, (tm // sub) * sub)
    if tm >= batch:
        return batch                          # one full-extent block (exempt from the 8-row rule)
    return tm


def _taylor_softmax_kernel(x_ref, o_ref, *, order):
    x = x_ref[...].astype(jnp.float32)

    # Horner evaluation of sum_{k=0..order} x^k / k!
    #   poly = (...((x/n! + 1/(n-1)!)*x + ...)*x + 1
    coeffs = [1.0 / factorial(k) for k in range(order, 0, -1)]
    poly = jnp.full_like(x, coeffs[0])
    for c in coeffs[1:]:
        poly = poly * x + c
    poly = poly * x + 1.0

    # Row-wise normalization. The block's last dim is the full (possibly
    # non-128-aligned) class extent, so the ragged-lane masking is handled by
    # the compiler; no explicit padded-lane mask is needed.
    denom = jnp.sum(poly, axis=-1, keepdims=True)     # (tm, 1)
    inv = pl.reciprocal(denom, approx=False)          # EUP; (tm, 1) column only
    o_ref[...] = (poly * inv).astype(o_ref.dtype)


def soft_margin_taylor_softmax(x: jax.Array, *, order: int = ORDER, tm=None) -> jax.Array:
    """Taylor softmax over the last axis of a (B, C) array of logits."""
    assert x.ndim == 2, "expected (batch, classes) logits"
    assert order >= 2 and order % 2 == 0, \
        "even Taylor order required (odd orders can produce negative denominators)"
    assert jnp.issubdtype(x.dtype, jnp.floating) and jnp.dtype(x.dtype).itemsize >= 2, \
        "supported input dtypes: float32 / bfloat16 / float16 (int8/fp8 packing not handled)"
    B, C = x.shape
    itemsize = jnp.dtype(x.dtype).itemsize

    vmem_limit = _vmem_limit_bytes()
    if tm is None:
        tm = _choose_tm(B, C, itemsize, vmem_budget=(vmem_limit * 4) // 5)

    kernel = functools.partial(_taylor_softmax_kernel, order=order)

    return pl.pallas_call(
        kernel,
        out_shape=jax.ShapeDtypeStruct((B, C), x.dtype),
        grid_spec=pltpu.PrefetchScalarGridSpec(
            num_scalar_prefetch=0,
            grid=(pl.cdiv(B, tm),),                         # partial final block if tm ∤ B
            in_specs=[pl.BlockSpec((tm, C), lambda i: (i, 0))],
            out_specs=pl.BlockSpec((tm, C), lambda i: (i, 0)),
        ),
        compiler_params=pltpu.CompilerParams(
            dimension_semantics=("parallel",),
            vmem_limit_bytes=vmem_limit,
        ),
    )(x)


def _reference(x: jax.Array, order: int = ORDER) -> jax.Array:
    # Pure-JAX reference of the same math (for the correctness check).
    xf = x.astype(jnp.float32)
    poly = jnp.ones_like(xf)
    term = jnp.ones_like(xf)
    for k in range(1, order + 1):
        term = term * xf / k
        poly = poly + term
    return (poly / jnp.sum(poly, axis=-1, keepdims=True)).astype(x.dtype)


if __name__ == "__main__":
    # 1) Tiny batch with a non-lane-aligned class count (ragged-lane reduction path).
    B, C = 6, 10
    x = jax.random.normal(jax.random.PRNGKey(0), (B, C), dtype=jnp.float32)
    out = jax.block_until_ready(soft_margin_taylor_softmax(x))
    ref = _reference(x)
    assert out.shape == (B, C) and out.dtype == x.dtype
    assert jnp.allclose(out, ref, atol=1e-5, rtol=1e-5)
    assert jnp.allclose(jnp.sum(out, axis=-1), jnp.ones((B,)), atol=1e-5)

    # 2) Multi-step grid with a partial final batch block (B not a multiple of tm).
    B2, C2 = 40, 128
    x2 = jax.random.normal(jax.random.PRNGKey(1), (B2, C2), dtype=jnp.float32)
    out2 = jax.block_until_ready(soft_margin_taylor_softmax(x2, tm=16))
    assert jnp.allclose(out2, _reference(x2), atol=1e-5, rtol=1e-5)

    # 3) Both ragged: partial final batch block AND non-128-aligned class count.
    B3, C3 = 37, 50
    x3 = jax.random.normal(jax.random.PRNGKey(2), (B3, C3), dtype=jnp.float32)
    out3 = jax.block_until_ready(soft_margin_taylor_softmax(x3, tm=8))
    assert jnp.allclose(out3, _reference(x3), atol=1e-5, rtol=1e-5)

    print("KERNEL_OK")
</pallas_src>

<mosaic_0001>
module attributes {stable_mosaic.version = 11 : i64} {
  func.func @_taylor_softmax_kernel(%arg0: i32, %arg1: memref<6x10xf32, #tpu.memory_space<vmem>>, %arg2: memref<6x10xf32, #tpu.memory_space<vmem>>) attributes {dimension_semantics = [#tpu.dimension_semantics<parallel>], iteration_bounds = array<i64: 1>, scalar_prefetch = 0 : i64, scratch_operands = 0 : i64, tpu.core_type = #tpu.core_type<tc>, window_params = [{transform_indices = @transform_0, window_bounds = array<i64: 6, 10>}, {transform_indices = @transform_1, window_bounds = array<i64: 6, 10>}]} {
    %c0 = arith.constant 0 : index
    %c0_0 = arith.constant 0 : index
    %0 = vector.load %arg1[%c0, %c0_0] : memref<6x10xf32, #tpu.memory_space<vmem>>, vector<6x10xf32>
    %cst = arith.constant 5.000000e-01 : f32
    %1 = vector.broadcast %cst : f32 to vector<6x10xf32>
    %2 = arith.mulf %1, %0 : vector<6x10xf32>
    %cst_1 = arith.constant 1.000000e+00 : f32
    %3 = vector.broadcast %cst_1 : f32 to vector<6x10xf32>
    %4 = arith.addf %2, %3 : vector<6x10xf32>
    %5 = arith.mulf %4, %0 : vector<6x10xf32>
    %cst_2 = arith.constant 1.000000e+00 : f32
    %6 = vector.broadcast %cst_2 : f32 to vector<6x10xf32>
    %7 = arith.addf %5, %6 : vector<6x10xf32>
    %cst_3 = arith.constant dense<0.000000e+00> : vector<6xf32>
    %8 = vector.multi_reduction <add>, %7, %cst_3 [1] : vector<6x10xf32> to vector<6xf32>
    %9 = vector.shape_cast %8 : vector<6xf32> to vector<6x1xf32>
    %10 = tpu.reciprocal %9 : vector<6x1xf32> -> vector<6x1xf32>
    %11 = vector.broadcast %10 : vector<6x1xf32> to vector<6x10xf32>
    %12 = arith.mulf %7, %11 : vector<6x10xf32>
    %c0_4 = arith.constant 0 : index
    %c0_5 = arith.constant 0 : index
    %13 = vector.load %arg2[%c0_4, %c0_5] : memref<6x10xf32, #tpu.memory_space<vmem>>, vector<6x10xf32>
    tpu.vector_store %arg2[%c0_4, %c0_5], %12 {strides = array<i32>} : memref<6x10xf32, #tpu.memory_space<vmem>>, vector<6x10xf32>,
    return
  }
  func.func @transform_0(%arg0: i32) -> (i32, i32) {
    %c0_i32 = arith.constant 0 : i32
    %c0_i32_0 = arith.constant 0 : i32
    return %arg0, %c0_i32 : i32, i32
  }
  func.func @transform_1(%arg0: i32) -> (i32, i32) {
    %c0_i32 = arith.constant 0 : i32
    %c0_i32_0 = arith.constant 0 : i32
    return %arg0, %c0_i32 : i32, i32
  }
}

</mosaic_0001>

<llo_original>
// kernel: tpu_custom_call.1
$region0: #{tpu_custom_call.1}
  #allocation0 [shape = 'u32[]', space=smem, size = 0x4, offset = 0x4, fixed_abs, tag = 'smem constant byte address 0x4 - core index']
  #allocation1 [shape = 'u32[144,128]{1,0:T(1,128)}', space=vmem, size = 0x12000, scoped, tag = 'internal scratch']
  %s0 = inlined_call_operand.hbm [shape: f32[6,10], index: 0, kind: input, shape index: {}]
  %s1 = inlined_call_operand.hbm [shape: f32[6,10], index: 1, kind: output, shape index: {}]
  %s2 = sld [smem:[#allocation0]]
  $region18: #{tpu_custom_call.1} parent=0
    _
  %s4 = ssub.s32 1, %s2
  %s5 = scalar_select 0, %s4, %s2
  $region1: #{tpu_custom_call.1} parent=0
    #allocation2 [shape = 'u8[4096]{0}', space=vmem, size = 0x1000, scoped, tag = 'input window, operand 0, single buffered']
    #allocation3 [shape = 's32[1]{0}', space=sflag, size = 0x4, scoped, tag = 'scoped memory for tpu_custom_call.1']
    #allocation4 [shape = 's32[1]{0}', space=sflag, size = 0x4, scoped, tag = 'scoped memory for tpu_custom_call.1']
    #allocation5 [shape = 'u8[4096]{0}', space=vmem, size = 0x1000, scoped, tag = 'output window, operand 0, single buffered']
    %6 = vsyncpa [#allocation3], 0
    %7 = vsyncpa [#allocation4], 0
    // Predicated region
    $region2: #{tpu_custom_call.1} parent=1 // pred_check
      _
    $region3: #{tpu_custom_call.1} parent=1 // pred_check_branch
      %9 = sbr.rel (0) target = $region5
    $region4: #{tpu_custom_call.1} parent=1 // pred_region
      %s11 = ssub.s32 128, 128
      %12 = vsyncadd [#allocation3], %s11
      %s14 = sshll.u32 [#allocation2], 4
      %s15 = int_to_ptr.vmem [resolvable:$true] %s14
      %17 = dma.hbm_to_vmem [thread:$0]  %s0, 128, %s15, [#allocation3]
    $region5: #{tpu_custom_call.1} parent=1 // pred_fallthru
      _
    // Predicated region
    $region6: #{tpu_custom_call.1} parent=1 // pred_check
      _
    $region7: #{tpu_custom_call.1} parent=1 // pred_check_branch
      %19 = sbr.rel (0) target = $region9
    $region8: #{tpu_custom_call.1} parent=1 // pred_region
      %20 = dma.done [#allocation3], 128
    $region9: #{tpu_custom_call.1} parent=1 // pred_fallthru
      _
    %v21 = vld [vmem:[#allocation2] sm:$0x3f]
    %v22 = vmul.f32 %v21, 0.5
    %v23 = vadd.f32 %v22, 1.0
    %v24 = vmul.f32 %v23, %v21
    %v25 = vadd.f32 %v24, 1.0
    %vm26 = vcmask 78848
    %v27 = vsel %vm26, %v25, 0.0
    %28 = vadd.xlane.f32.xlu0 %v27
    %v29 = vpop.xlane.xlu0 %28
    %v30 = vrcp.pop %v29
    %v31 = vmul.f32 %v25, %v30
    %32 = vst.msk [vmem:[#allocation5] sm:$0x3f] %vm26, %v31
    // Predicated region
    $region10: #{tpu_custom_call.1} parent=1 // pred_check
      _
    $region11: #{tpu_custom_call.1} parent=1 // pred_check_branch
      %34 = sbr.rel (0) target = $region13
    $region12: #{tpu_custom_call.1} parent=1 // pred_region
      %s36 = ssub.s32 128, 128
      %37 = vsyncadd [#allocation4], %s36
      %s39 = sshll.u32 [#allocation5], 4
      %s40 = int_to_ptr.vmem [resolvable:$true] %s39
      %42 = dma.vmem_to_hbm [thread:$0]  %s40, 128, %s1, [#allocation4]
    $region13: #{tpu_custom_call.1} parent=1 // pred_fallthru
      _
    // Predicated region
    $region14: #{tpu_custom_call.1} parent=1 // pred_check
      _
    $region15: #{tpu_custom_call.1} parent=1 // pred_check_branch
      %44 = sbr.rel (0) target = $region17
    $region16: #{tpu_custom_call.1} parent=1 // pred_region
      %45 = dma.done [#allocation4], 128
    $region17: #{tpu_custom_call.1} parent=1 // pred_fallthru
      _
    %46 = vsyncpa [#allocation3], 1
    %47 = vsyncpa [#allocation4], 1

</llo_original>
